<compile_context>
chip_gen: v6e
topology: v6e:2x2x1
jax: 0.10.0
libtpu: 0.0.40
codegen_flags: <defaults>
</compile_context>

<pallas_src>
import jax
import jax.numpy as jnp
from jax.experimental import pallas as pl
from jax.experimental.pallas import tpu as pltpu

IN_FEATURES = 2048
OUT_FEATURES = 10
LANE = 128
OUT_PAD = 128          # pad the 10-wide output to full 128 lanes (unmasked stores)
MAX_BLOCK_H = 512      # hidden-dim tile; bounds VMEM independent of hidden size


def _round_up(x, m):
    return ((x + m - 1) // m) * m


def ffn_kernel(x_ref, w1_ref, b1_ref, w2_ref, b2_ref, o_ref, acc_ref):
    # x_ref : (tb, 2048)  input dtype      w1_ref: (2048, th)  bf16
    # b1_ref: (1, th)     f32              w2_ref: (th, 128)   f32
    # b2_ref: (1, 128)    f32              o_ref : (tb, 128)   input dtype
    # acc_ref:(tb, 128)   f32 scratch accumulator (persists across hidden tiles)
    k = pl.program_id(1)

    @pl.when(k == 0)
    def _():
        acc_ref[...] = jnp.zeros_like(acc_ref)

    # Cast the x tile to bf16 on-chip (VPU work, hidden under DMA/MXU) instead
    # of materializing a casted copy in HBM in the wrapper.
    x = x_ref[...].astype(w1_ref.dtype)
    h = jnp.dot(x, w1_ref[...], preferred_element_type=jnp.float32)
    h = jnp.maximum(h + b1_ref[...], 0.0)                      # bias + ReLU in f32
    # fc2 in f32: only ~OUT_PAD/IN_FEATURES of the MACs, tightens accuracy.
    acc_ref[...] += jnp.dot(h, w2_ref[...], preferred_element_type=jnp.float32)

    @pl.when(k == pl.num_programs(1) - 1)
    def _():
        o_ref[...] = (acc_ref[...] + b2_ref[...]).astype(o_ref.dtype)


def prepare_params(w1, b1, w2, b2, *, compute_dtype=jnp.bfloat16):
    """Pad + cast parameters ONCE (outside the per-forward hot path).

    w1: (2048, H); b1: (H,) or (1,H); w2: (H, 10); b2: (10,) or (1,10).
    (PyTorch stores Linear weights as (out, in); transpose before calling.)
    """
    H = w1.shape[1]
    assert w1.shape == (IN_FEATURES, H)
    assert w2.shape == (H, OUT_FEATURES)

    H128 = _round_up(H, LANE)
    block_h = min(MAX_BLOCK_H, H128)
    H_pad = _round_up(H, block_h)          # block_h divides H_pad by construction

    b1 = jnp.reshape(b1, (1, H))
    b2 = jnp.reshape(b2, (1, OUT_FEATURES))

    w1_p = jnp.pad(w1, ((0, 0), (0, H_pad - H))).astype(compute_dtype)
    b1_p = jnp.pad(b1, ((0, 0), (0, H_pad - H))).astype(jnp.float32)
    # W2 / biases stay f32: tiny, and fc2 in f32 tightens accuracy for free.
    w2_p = jnp.pad(w2, ((0, H_pad - H), (0, OUT_PAD - OUT_FEATURES))).astype(jnp.float32)
    b2_p = jnp.pad(b2, ((0, 0), (0, OUT_PAD - OUT_FEATURES))).astype(jnp.float32)
    return dict(w1=w1_p, b1=b1_p, w2=w2_p, b2=b2_p, block_h=block_h)


def _pick_block_b(B):
    if B <= 256:
        return B                                  # == full dim, always a legal block
    if B <= 512:
        return _round_up(-(-B // 2), 16)          # >= 2 programs for v7x's 2 TCs
    if B < 4096:
        return 512                                # ~85%+ of HBM roofline per tile
    return 1024


def feedforward(x, params, *, block_b=None):
    """x: (B, 2048), original dtype (no wrapper-side pad/cast of x)."""
    B, F = x.shape
    assert F == IN_FEATURES
    w1_p, b1_p, w2_p, b2_p = params["w1"], params["b1"], params["w2"], params["b2"]
    block_h = params["block_h"]
    H_pad = w1_p.shape[1]
    out_dtype = x.dtype

    if block_b is None:
        block_b = _pick_block_b(B)
    else:
        block_b = min(_round_up(block_b, 16), _round_up(B, 16))

    nb = pl.cdiv(B, block_b)        # partial tail block handled by Pallas masking
    nh = H_pad // block_h

    cost = pl.CostEstimate(
        flops=2 * B * IN_FEATURES * H_pad + 2 * B * H_pad * OUT_PAD,
        transcendentals=0,
        bytes_accessed=(B * IN_FEATURES * x.dtype.itemsize          # x stream (no copy)
                        + IN_FEATURES * H_pad * w1_p.dtype.itemsize  # W1 (bf16)
                        + H_pad * OUT_PAD * 4 + H_pad * 4 + OUT_PAD * 4
                        + B * OUT_PAD * jnp.dtype(out_dtype).itemsize),
    )

    out_padded = pl.pallas_call(
        ffn_kernel,
        out_shape=jax.ShapeDtypeStruct((B, OUT_PAD), out_dtype),
        grid_spec=pltpu.PrefetchScalarGridSpec(
            num_scalar_prefetch=0,
            grid=(nb, nh),
            in_specs=[
                pl.BlockSpec((block_b, IN_FEATURES), lambda i, k: (i, 0)),  # x tile
                pl.BlockSpec((IN_FEATURES, block_h), lambda i, k: (0, k)),  # W1 chunk
                pl.BlockSpec((1, block_h), lambda i, k: (0, k)),            # b1 chunk
                pl.BlockSpec((block_h, OUT_PAD), lambda i, k: (k, 0)),      # W2 chunk
                pl.BlockSpec((1, OUT_PAD), lambda i, k: (0, 0)),            # b2
            ],
            out_specs=pl.BlockSpec((block_b, OUT_PAD), lambda i, k: (i, 0)),
            scratch_shapes=[pltpu.VMEM((block_b, OUT_PAD), jnp.float32)],
        ),
        compiler_params=pltpu.CompilerParams(
            dimension_semantics=("parallel", "arbitrary"),
            vmem_limit_bytes=32 * 1024 * 1024,
        ),
        cost_estimate=cost,
    )(x, w1_p, b1_p, w2_p, b2_p)

    # Downstream ops may consume out_padded (lane-dense) directly; slice only
    # for API parity with the PyTorch module.
    return out_padded[:B, :OUT_FEATURES]


def init_params(key, hidden_size, dtype=jnp.float32):
    # Deterministic init mimicking nn.Linear's U(-1/sqrt(fan_in), 1/sqrt(fan_in)).
    k1, k2, k3, k4 = jax.random.split(key, 4)
    bound1 = 1.0 / (IN_FEATURES ** 0.5)
    bound2 = 1.0 / (hidden_size ** 0.5)
    w1 = jax.random.uniform(k1, (IN_FEATURES, hidden_size), dtype,
                            minval=-bound1, maxval=bound1)
    b1 = jax.random.uniform(k2, (1, hidden_size), dtype,
                            minval=-bound1, maxval=bound1)
    w2 = jax.random.uniform(k3, (hidden_size, OUT_FEATURES), dtype,
                            minval=-bound2, maxval=bound2)
    b2 = jax.random.uniform(k4, (1, OUT_FEATURES), dtype,
                            minval=-bound2, maxval=bound2)
    return w1, b1, w2, b2


def _bf16_consistent_ref(x, w1, b1, w2, b2):
    # Same math as the kernel: bf16 x/W1 operands, f32 accumulation, f32 fc2.
    hp = jax.lax.Precision.HIGHEST
    f32 = jnp.float32
    xb = x.astype(jnp.bfloat16).astype(f32)
    w1b = w1.astype(jnp.bfloat16).astype(f32)
    h = jnp.maximum(jnp.dot(xb, w1b, precision=hp) + b1.reshape(1, -1), 0.0)
    return jnp.dot(h, w2.astype(f32), precision=hp) + b2.reshape(1, -1)


if __name__ == "__main__":
    key = jax.random.PRNGKey(0)
    kx1, kp1, kx2, kp2 = jax.random.split(key, 4)

    # ---- test 1: tiny shapes, exact tiling ----------------------------------
    batch, hidden = 8, 32
    x = jax.random.normal(kx1, (batch, IN_FEATURES), jnp.float32)
    w1, b1, w2, b2 = init_params(kp1, hidden)
    params = prepare_params(w1, b1, w2, b2)

    out = jax.block_until_ready(feedforward(x, params))
    assert out.shape == (batch, OUT_FEATURES)

    ref = _bf16_consistent_ref(x, w1, b1, w2, b2)
    assert jnp.allclose(out, ref, atol=5e-3, rtol=5e-3), \
        float(jnp.max(jnp.abs(out - ref)))

    # Pure-f32 PyTorch-equivalent forward (looser: bf16 operand quantization).
    ref_f32 = jnp.maximum(x @ w1 + b1, 0.0) @ w2 + b2
    assert jnp.allclose(out, ref_f32, atol=5e-2, rtol=5e-2)

    # ---- test 2: uneven batch tile + hidden not a multiple of 128 -----------
    batch2, hidden2 = 40, 96
    x2 = jax.random.normal(kx2, (batch2, IN_FEATURES), jnp.float32)
    w1b_, b1b_, w2b_, b2b_ = init_params(kp2, hidden2)
    params2 = prepare_params(w1b_, b1b_, w2b_, b2b_)

    out2 = jax.block_until_ready(feedforward(x2, params2, block_b=16))
    assert out2.shape == (batch2, OUT_FEATURES)
    ref2 = _bf16_consistent_ref(x2, w1b_, b1b_, w2b_, b2b_)
    assert jnp.allclose(out2, ref2, atol=5e-3, rtol=5e-3), \
        float(jnp.max(jnp.abs(out2 - ref2)))

    print("KERNEL_OK")
</pallas_src>

<mosaic_0001>
module attributes {stable_mosaic.version = 11 : i64} {
  func.func @ffn_kernel(%arg0: i32, %arg1: i32, %arg2: memref<8x2048xf32, #tpu.memory_space<vmem>>, %arg3: memref<2048x128xbf16, #tpu.memory_space<vmem>>, %arg4: memref<1x128xf32, #tpu.memory_space<vmem>>, %arg5: memref<128x128xf32, #tpu.memory_space<vmem>>, %arg6: memref<1x128xf32, #tpu.memory_space<vmem>>, %arg7: memref<8x128xf32, #tpu.memory_space<vmem>>, %arg8: memref<8x128xf32, #tpu.memory_space<vmem>>) attributes {dimension_semantics = [#tpu.dimension_semantics<parallel>, #tpu.dimension_semantics<arbitrary>], iteration_bounds = array<i64: 1, 1>, scalar_prefetch = 0 : i64, scratch_operands = 1 : i64, tpu.core_type = #tpu.core_type<tc>, window_params = [{transform_indices = @transform_0, window_bounds = array<i64: 8, 2048>}, {transform_indices = @transform_1, window_bounds = array<i64: 2048, 128>}, {transform_indices = @transform_2, window_bounds = array<i64: 1, 128>}, {transform_indices = @transform_3, window_bounds = array<i64: 128, 128>}, {pipeline_mode = #tpu.pipeline_mode<synchronous>, transform_indices = @transform_4, window_bounds = array<i64: 1, 128>}, {transform_indices = @transform_5, window_bounds = array<i64: 8, 128>}]} {
    %c0_i32 = arith.constant 0 : i32
    %0 = arith.cmpi eq, %arg1, %c0_i32 : i32
    %1 = arith.extui %0 : i1 to i32
    %c0_i32_0 = arith.constant 0 : i32
    %2 = arith.cmpi ne, %1, %c0_i32_0 : i32
    scf.if %2 {
      %cst_16 = arith.constant 0.000000e+00 : f32
      %20 = vector.broadcast %cst_16 : f32 to vector<8x128xf32>
      %c0_17 = arith.constant 0 : index
      %c0_18 = arith.constant 0 : index
      %21 = vector.load %arg8[%c0_17, %c0_18] : memref<8x128xf32, #tpu.memory_space<vmem>>, vector<8x128xf32>
      tpu.vector_store %arg8[%c0_17, %c0_18], %20 {strides = array<i32>} : memref<8x128xf32, #tpu.memory_space<vmem>>, vector<8x128xf32>,
    } else {
    }
    %c0 = arith.constant 0 : index
    %c0_1 = arith.constant 0 : index
    %3 = vector.load %arg2[%c0, %c0_1] : memref<8x2048xf32, #tpu.memory_space<vmem>>, vector<8x2048xf32>
    %4 = arith.truncf %3 : vector<8x2048xf32> to vector<8x2048xbf16>
    %c0_2 = arith.constant 0 : index
    %c0_3 = arith.constant 0 : index
    %5 = vector.load %arg3[%c0_2, %c0_3] : memref<2048x128xbf16, #tpu.memory_space<vmem>>, vector<2048x128xbf16>
    %cst = arith.constant dense<0.000000e+00> : vector<8x128xf32>
    %6 = tpu.matmul %4, %5, %cst {dimension_numbers = #tpu.dot_dimension_numbers<[1], [0], [0], [1], [0, 0, 1, 1], [], []>} : vector<8x2048xbf16>, vector<2048x128xbf16>, vector<8x128xf32> -> vector<8x128xf32>
    %c0_4 = arith.constant 0 : index
    %c0_5 = arith.constant 0 : index
    %7 = vector.load %arg4[%c0_4, %c0_5] : memref<1x128xf32, #tpu.memory_space<vmem>>, vector<1x128xf32>
    %8 = vector.broadcast %7 : vector<1x128xf32> to vector<8x128xf32>
    %9 = arith.addf %6, %8 : vector<8x128xf32>
    %cst_6 = arith.constant 0.000000e+00 : f32
    %10 = vector.broadcast %cst_6 : f32 to vector<8x128xf32>
    %11 = arith.maximumf %9, %10 : vector<8x128xf32>
    %c0_7 = arith.constant 0 : index
    %c0_8 = arith.constant 0 : index
    %12 = vector.load %arg8[%c0_7, %c0_8] : memref<8x128xf32, #tpu.memory_space<vmem>>, vector<8x128xf32>
    %c0_9 = arith.constant 0 : index
    %c0_10 = arith.constant 0 : index
    %13 = vector.load %arg5[%c0_9, %c0_10] : memref<128x128xf32, #tpu.memory_space<vmem>>, vector<128x128xf32>
    %cst_11 = arith.constant dense<0.000000e+00> : vector<8x128xf32>
    %14 = tpu.matmul %11, %13, %cst_11 {dimension_numbers = #tpu.dot_dimension_numbers<[1], [0], [0], [1], [0, 0, 1, 1], [], []>} : vector<8x128xf32>, vector<128x128xf32>, vector<8x128xf32> -> vector<8x128xf32>
    %15 = arith.addf %12, %14 : vector<8x128xf32>
    %c0_12 = arith.constant 0 : index
    %c0_13 = arith.constant 0 : index
    %16 = vector.load %arg8[%c0_12, %c0_13] : memref<8x128xf32, #tpu.memory_space<vmem>>, vector<8x128xf32>
    tpu.vector_store %arg8[%c0_12, %c0_13], %15 {strides = array<i32>} : memref<8x128xf32, #tpu.memory_space<vmem>>, vector<8x128xf32>,
    %c0_i32_14 = arith.constant 0 : i32
    %17 = arith.cmpi eq, %arg1, %c0_i32_14 : i32
    %18 = arith.extui %17 : i1 to i32
    %c0_i32_15 = arith.constant 0 : i32
    %19 = arith.cmpi ne, %18, %c0_i32_15 : i32
    scf.if %19 {
      %c0_16 = arith.constant 0 : index
      %c0_17 = arith.constant 0 : index
      %20 = vector.load %arg8[%c0_16, %c0_17] : memref<8x128xf32, #tpu.memory_space<vmem>>, vector<8x128xf32>
      %c0_18 = arith.constant 0 : index
      %c0_19 = arith.constant 0 : index
      %21 = vector.load %arg6[%c0_18, %c0_19] : memref<1x128xf32, #tpu.memory_space<vmem>>, vector<1x128xf32>
      %22 = vector.broadcast %21 : vector<1x128xf32> to vector<8x128xf32>
      %23 = arith.addf %20, %22 : vector<8x128xf32>
      %c0_20 = arith.constant 0 : index
      %c0_21 = arith.constant 0 : index
      %24 = vector.load %arg7[%c0_20, %c0_21] : memref<8x128xf32, #tpu.memory_space<vmem>>, vector<8x128xf32>
      tpu.vector_store %arg7[%c0_20, %c0_21], %23 {strides = array<i32>} : memref<8x128xf32, #tpu.memory_space<vmem>>, vector<8x128xf32>,
    } else {
    }
    return
  }
  func.func @transform_0(%arg0: i32, %arg1: i32) -> (i32, i32) {
    %c0_i32 = arith.constant 0 : i32
    %c0_i32_0 = arith.constant 0 : i32
    return %arg0, %c0_i32 : i32, i32
  }
  func.func @transform_1(%arg0: i32, %arg1: i32) -> (i32, i32) {
    %c0_i32 = arith.constant 0 : i32
    %c0_i32_0 = arith.constant 0 : i32
    return %c0_i32, %arg1 : i32, i32
  }
  func.func @transform_2(%arg0: i32, %arg1: i32) -> (i32, i32) {
    %c0_i32 = arith.constant 0 : i32
    %c0_i32_0 = arith.constant 0 : i32
    return %c0_i32, %arg1 : i32, i32
  }
  func.func @transform_3(%arg0: i32, %arg1: i32) -> (i32, i32) {
    %c0_i32 = arith.constant 0 : i32
    %c0_i32_0 = arith.constant 0 : i32
    return %arg1, %c0_i32 : i32, i32
  }
  func.func @transform_4(%arg0: i32, %arg1: i32) -> (i32, i32) {
    %c0_i32 = arith.constant 0 : i32
    %c0_i32_0 = arith.constant 0 : i32
    %c0_i32_1 = arith.constant 0 : i32
    return %c0_i32, %c0_i32_0 : i32, i32
  }
  func.func @transform_5(%arg0: i32, %arg1: i32) -> (i32, i32) {
    %c0_i32 = arith.constant 0 : i32
    %c0_i32_0 = arith.constant 0 : i32
    return %arg0, %c0_i32 : i32, i32
  }
}

</mosaic_0001>

<llo_original>
// kernel: tpu_custom_call.1
$region0: #{tpu_custom_call.1}
  #allocation0 [shape = 'u32[]', space=smem, size = 0x4, offset = 0x4, fixed_abs, tag = 'smem constant byte address 0x4 - core index']
  #allocation1 [shape = 'u32[144,128]{1,0:T(1,128)}', space=vmem, size = 0x12000, scoped, tag = 'internal scratch']
  #allocation2 [shape = 'f32[8,128]{1,0:T(8,128)}', space=vmem, size = 0x1000, scoped, tag = 'scratch operand']
  %s0 = inlined_call_operand.hbm [shape: f32[8,2048], index: 0, kind: input, shape index: {}]
  %s1 = inlined_call_operand.hbm [shape: bf16[2048,128], index: 1, kind: input, shape index: {}]
  %s2 = inlined_call_operand.vmem [shape: f32[1,128], index: 2, kind: input, shape index: {}]
  %s3 = inlined_call_operand.hbm [shape: f32[128,128], index: 3, kind: input, shape index: {}]
  %s4 = inlined_call_operand.vmem [shape: f32[1,128], index: 4, kind: input, shape index: {}]
  %s5 = inlined_call_operand.hbm [shape: f32[8,128], index: 5, kind: output, shape index: {}]
  %s6 = sld [smem:[#allocation0]]
  $region50: #{tpu_custom_call.1} parent=0
    _
  %s8 = ssub.s32 1, %s6
  %s9 = scalar_select 0, %s8, %s6
  $region1: #{tpu_custom_call.1} parent=0
    #allocation3 [shape = 'u8[65536]{0}', space=vmem, size = 0x10000, scoped, tag = 'input window, operand 0, single buffered']
    #allocation4 [shape = 's32[1]{0}', space=sflag, size = 0x4, scoped, tag = 'scoped memory for tpu_custom_call.1']
    #allocation5 [shape = 's32[1]{0}', space=sflag, size = 0x4, scoped, tag = 'scoped memory for tpu_custom_call.1']
    #allocation6 [shape = 'u8[524288]{0}', space=vmem, size = 0x80000, scoped, tag = 'input window, operand 1, single buffered']
    #allocation7 [shape = 's32[1]{0}', space=sflag, size = 0x4, scoped, tag = 'scoped memory for tpu_custom_call.1']
    #allocation8 [shape = 'u8[65536]{0}', space=vmem, size = 0x10000, scoped, tag = 'input window, operand 3, single buffered']
    #allocation9 [shape = 'u8[4096]{0}', space=vmem, size = 0x1000, scoped, tag = 'output window, operand 0, single buffered']
    %10 = vsyncpa [#allocation4], 0
    %11 = vsyncpa [#allocation7], 0
    %12 = vsyncpa [#allocation5], 0
    // Predicated region
    $region2: #{tpu_custom_call.1} parent=1 // pred_check
      _
    $region3: #{tpu_custom_call.1} parent=1 // pred_check_branch
      %14 = sbr.rel (0) target = $region5
    $region4: #{tpu_custom_call.1} parent=1 // pred_region
      %s16 = ssub.s32 2048, 2048
      %17 = vsyncadd [#allocation4], %s16
      %s19 = sshll.u32 [#allocation3], 4
      %s20 = int_to_ptr.vmem [resolvable:$true] %s19
      %22 = dma.hbm_to_vmem [thread:$0]  %s0, 2048, %s20, [#allocation4]
    $region5: #{tpu_custom_call.1} parent=1 // pred_fallthru
      _
    // Predicated region
    $region6: #{tpu_custom_call.1} parent=1 // pred_check
      _
    $region7: #{tpu_custom_call.1} parent=1 // pred_check_branch
      %24 = sbr.rel (0) target = $region9
    $region8: #{tpu_custom_call.1} parent=1 // pred_region
      %s26 = ssub.s32 16384, 16384
      %27 = vsyncadd [#allocation7], %s26
      %s28 = sshll.u32 [#allocation6], 4
      %s29 = int_to_ptr.vmem [resolvable:$true] %s28
      %34 = dma.hbm_to_vmem [thread:$0]  %s1, 16384, %s29, [#allocation7], 64, 64, 4
    $region9: #{tpu_custom_call.1} parent=1 // pred_fallthru
      _
    // Predicated region
    $region10: #{tpu_custom_call.1} parent=1 // pred_check
      _
    $region11: #{tpu_custom_call.1} parent=1 // pred_check_branch
      %36 = sbr.rel (0) target = $region13
    $region12: #{tpu_custom_call.1} parent=1 // pred_region
      _
    $region13: #{tpu_custom_call.1} parent=1 // pred_fallthru
      _
    // Predicated region
    $region14: #{tpu_custom_call.1} parent=1 // pred_check
      _
    $region15: #{tpu_custom_call.1} parent=1 // pred_check_branch
      %38 = sbr.rel (0) target = $region17
    $region16: #{tpu_custom_call.1} parent=1 // pred_region
      %s40 = ssub.s32 2048, 2048
      %41 = vsyncadd [#allocation7], %s40
      %s42 = sshll.u32 [#allocation8], 4
      %s43 = int_to_ptr.vmem [resolvable:$true] %s42
      %48 = dma.hbm_to_vmem [thread:$0]  %s3, 2048, %s43, [#allocation7], 128, 128, 8
    $region17: #{tpu_custom_call.1} parent=1 // pred_fallthru
      _
    // Predicated region
    $region18: #{tpu_custom_call.1} parent=1 // pred_check
      _
    $region19: #{tpu_custom_call.1} parent=1 // pred_check_branch
      %50 = sbr.rel (0) target = $region21
    $region20: #{tpu_custom_call.1} parent=1 // pred_region
      _
    $region21: #{tpu_custom_call.1} parent=1 // pred_fallthru
      _
    // Predicated region
    $region22: #{tpu_custom_call.1} parent=1 // pred_check
      _
    $region23: #{tpu_custom_call.1} parent=1 // pred_check_branch
      %52 = sbr.rel (0) target = $region25
    $region24: #{tpu_custom_call.1} parent=1 // pred_region
      %53 = dma.done [#allocation4], 2048
    $region25: #{tpu_custom_call.1} parent=1 // pred_fallthru
      _
    // Predicated region
    $region26: #{tpu_custom_call.1} parent=1 // pred_check
      _
    $region27: #{tpu_custom_call.1} parent=1 // pred_check_branch
      %55 = sbr.rel (0) target = $region29
    $region28: #{tpu_custom_call.1} parent=1 // pred_region
      %56 = dma.done [#allocation7], 16384
    $region29: #{tpu_custom_call.1} parent=1 // pred_fallthru
      _
    // Predicated region
    $region30: #{tpu_custom_call.1} parent=1 // pred_check
      _
    $region31: #{tpu_custom_call.1} parent=1 // pred_check_branch
      %58 = sbr.rel (0) target = $region33
    $region32: #{tpu_custom_call.1} parent=1 // pred_region
      %59 = dma.done [#allocation7], 2048
    $region33: #{tpu_custom_call.1} parent=1 // pred_fallthru
      _
    %p61 = scmp.eq.s32.totalorder 0, 0
    // Predicated region
    $region34: #{tpu_custom_call.1} parent=1 // pred_check
      %p62 = pneg %p61
    $region35: #{tpu_custom_call.1} parent=1 // pred_check_branch
      %64 = sbr.rel (%p62) target = $region37
    $region36: #{tpu_custom_call.1} parent=1 // pred_region
      %65 = vst [vmem:[#allocation2] sm:$0xff] 0.0
    $region37: #{tpu_custom_call.1} parent=1 // pred_fallthru
      _
    %v66 = vld [vmem:[#allocation3] sm:$0xff]
    %v67 = vld [vmem:[#allocation3 + $0x8] sm:$0xff]
    %v68 = vld [vmem:[#allocation3 + $0x10] sm:$0xff]
    %v69 = vld [vmem:[#allocation3 + $0x18] sm:$0xff]
    %v70 = vld [vmem:[#allocation3 + $0x20] sm:$0xff]
    %v71 = vld [vmem:[#allocation3 + $0x28] sm:$0xff]
    %v72 = vld [vmem:[#allocation3 + $0x30] sm:$0xff]
    %v73 = vld [vmem:[#allocation3 + $0x38] sm:$0xff]
    %v74 = vld [vmem:[#allocation3 + $0x40] sm:$0xff]
    %v75 = vld [vmem:[#allocation3 + $0x48] sm:$0xff]
    %v76 = vld [vmem:[#allocation3 + $0x50] sm:$0xff]
    %v77 = vld [vmem:[#allocation3 + $0x58] sm:$0xff]
    %v78 = vld [vmem:[#allocation3 + $0x60] sm:$0xff]
    %v79 = vld [vmem:[#allocation3 + $0x68] sm:$0xff]
    %v80 = vld [vmem:[#allocation3 + $0x70] sm:$0xff]
    %v81 = vld [vmem:[#allocation3 + $0x78] sm:$0xff]
    %v82 = vpack.c.bf16 %v66, %v66
    %v83 = vpack.c.bf16 %v67, %v67
    %v84 = vpack.c.bf16 %v68, %v68
    %v85 = vpack.c.bf16 %v69, %v69
    %v86 = vpack.c.bf16 %v70, %v70
    %v87 = vpack.c.bf16 %v71, %v71
    %v88 = vpack.c.bf16 %v72, %v72
    %v89 = vpack.c.bf16 %v73, %v73
    %v90 = vpack.c.bf16 %v74, %v74
    %v91 = vpack.c.bf16 %v75, %v75
    %v92 = vpack.c.bf16 %v76, %v76
    %v93 = vpack.c.bf16 %v77, %v77
    %v94 = vpack.c.bf16 %v78, %v78
    %v95 = vpack.c.bf16 %v79, %v79
    %v96 = vpack.c.bf16 %v80, %v80
    %v97 = vpack.c.bf16 %v81, %v81
    %v98 = vld [vmem:[#allocation6] sm:$0xf]
    %v99 = vld [vmem:[#allocation6 + $0x4] sm:$0xf]
    %v100 = vld [vmem:[#allocation6 + $0x8] sm:$0xf]
    %v101 = vld [vmem:[#allocation6 + $0xc] sm:$0xf]
    %v102 = vld [vmem:[#allocation6 + $0x10] sm:$0xf]
    %v103 = vld [vmem:[#allocation6 + $0x14] sm:$0xf]
    %v104 = vld [vmem:[#allocation6 + $0x18] sm:$0xf]
    %v105 = vld [vmem:[#allocation6 + $0x1c] sm:$0xf]
    %v106 = vld [vmem:[#allocation6 + $0x20] sm:$0xf]
    %v107 = vld [vmem:[#allocation6 + $0x24] sm:$0xf]
    %v108 = vld [vmem:[#allocation6 + $0x28] sm:$0xf]
    %v109 = vld [vmem:[#allocation6 + $0x2c] sm:$0xf]
    %v110 = vld [vmem:[#allocation6 + $0x30] sm:$0xf]
    %v111 = vld [vmem:[#allocation6 + $0x34] sm:$0xf]
    %v112 = vld [vmem:[#allocation6 + $0x38] sm:$0xf]
    %v113 = vld [vmem:[#allocation6 + $0x3c] sm:$0xf]
    %v114 = vld [vmem:[#allocation6 + $0x40] sm:$0xf]
    %v115 = vld [vmem:[#allocation6 + $0x44] sm:$0xf]
    %v116 = vld [vmem:[#allocation6 + $0x48] sm:$0xf]
    %v117 = vld [vmem:[#allocation6 + $0x4c] sm:$0xf]
    %v118 = vld [vmem:[#allocation6 + $0x50] sm:$0xf]
    %v119 = vld [vmem:[#allocation6 + $0x54] sm:$0xf]
    %v120 = vld [vmem:[#allocation6 + $0x58] sm:$0xf]
    %v121 = vld [vmem:[#allocation6 + $0x5c] sm:$0xf]
    %v122 = vld [vmem:[#allocation6 + $0x60] sm:$0xf]
    %v123 = vld [vmem:[#allocation6 + $0x64] sm:$0xf]
    %v124 = vld [vmem:[#allocation6 + $0x68] sm:$0xf]
    %v125 = vld [vmem:[#allocation6 + $0x6c] sm:$0xf]
    %v126 = vld [vmem:[#allocation6 + $0x70] sm:$0xf]
    %v127 = vld [vmem:[#allocation6 + $0x74] sm:$0xf]
    %v128 = vld [vmem:[#allocation6 + $0x78] sm:$0xf]
    %v129 = vld [vmem:[#allocation6 + $0x7c] sm:$0xf]
    %v130 = vld [vmem:[#allocation6 + $0x80] sm:$0xf]
    %v131 = vld [vmem:[#allocation6 + $0x84] sm:$0xf]
    %v132 = vld [vmem:[#allocation6 + $0x88] sm:$0xf]
    %v133 = vld [vmem:[#allocation6 + $0x8c] sm:$0xf]
    %v134 = vld [vmem:[#allocation6 + $0x90] sm:$0xf]
    %v135 = vld [vmem:[#allocation6 + $0x94] sm:$0xf]
    %v136 = vld [vmem:[#allocation6 + $0x98] sm:$0xf]
    %v137 = vld [vmem:[#allocation6 + $0x9c] sm:$0xf]
    %v138 = vld [vmem:[#allocation6 + $0xa0] sm:$0xf]
    %v139 = vld [vmem:[#allocation6 + $0xa4] sm:$0xf]
    %v140 = vld [vmem:[#allocation6 + $0xa8] sm:$0xf]
    %v141 = vld [vmem:[#allocation6 + $0xac] sm:$0xf]
    %v142 = vld [vmem:[#allocation6 + $0xb0] sm:$0xf]
    %v143 = vld [vmem:[#allocation6 + $0xb4] sm:$0xf]
    %v144 = vld [vmem:[#allocation6 + $0xb8] sm:$0xf]
    %v145 = vld [vmem:[#allocation6 + $0xbc] sm:$0xf]
    %v146 = vld [vmem:[#allocation6 + $0xc0] sm:$0xf]
    %v147 = vld [vmem:[#allocation6 + $0xc4] sm:$0xf]
    %v148 = vld [vmem:[#allocation6 + $0xc8] sm:$0xf]
    %v149 = vld [vmem:[#allocation6 + $0xcc] sm:$0xf]
    %v150 = vld [vmem:[#allocation6 + $0xd0] sm:$0xf]
    %v151 = vld [vmem:[#allocation6 + $0xd4] sm:$0xf]
    %v152 = vld [vmem:[#allocation6 + $0xd8] sm:$0xf]
    %v153 = vld [vmem:[#allocation6 + $0xdc] sm:$0xf]
    %v154 = vld [vmem:[#allocation6 + $0xe0] sm:$0xf]
    %v155 = vld [vmem:[#allocation6 + $0xe4] sm:$0xf]
    %v156 = vld [vmem:[#allocation6 + $0xe8] sm:$0xf]
    %v157 = vld [vmem:[#allocation6 + $0xec] sm:$0xf]
    %v158 = vld [vmem:[#allocation6 + $0xf0] sm:$0xf]
    %v159 = vld [vmem:[#allocation6 + $0xf4] sm:$0xf]
    %v160 = vld [vmem:[#allocation6 + $0xf8] sm:$0xf]
    %v161 = vld [vmem:[#allocation6 + $0xfc] sm:$0xf]
    %v162 = vld [vmem:[#allocation6 + $0x100] sm:$0xf]
    %v163 = vld [vmem:[#allocation6 + $0x104] sm:$0xf]
    %v164 = vld [vmem:[#allocation6 + $0x108] sm:$0xf]
    %v165 = vld [vmem:[#allocation6 + $0x10c] sm:$0xf]
    %v166 = vld [vmem:[#allocation6 + $0x110] sm:$0xf]
    %v167 = vld [vmem:[#allocation6 + $0x114] sm:$0xf]
    %v168 = vld [vmem:[#allocation6 + $0x118] sm:$0xf]
    %v169 = vld [vmem:[#allocation6 + $0x11c] sm:$0xf]
    %v170 = vld [vmem:[#allocation6 + $0x120] sm:$0xf]
    %v171 = vld [vmem:[#allocation6 + $0x124] sm:$0xf]
    %v172 = vld [vmem:[#allocation6 + $0x128] sm:$0xf]
    %v173 = vld [vmem:[#allocation6 + $0x12c] sm:$0xf]
    %v174 = vld [vmem:[#allocation6 + $0x130] sm:$0xf]
    %v175 = vld [vmem:[#allocation6 + $0x134] sm:$0xf]
    %v176 = vld [vmem:[#allocation6 + $0x138] sm:$0xf]
    %v177 = vld [vmem:[#allocation6 + $0x13c] sm:$0xf]
    %v178 = vld [vmem:[#allocation6 + $0x140] sm:$0xf]
    %v179 = vld [vmem:[#allocation6 + $0x144] sm:$0xf]
    %v180 = vld [vmem:[#allocation6 + $0x148] sm:$0xf]
    %v181 = vld [vmem:[#allocation6 + $0x14c] sm:$0xf]
    %v182 = vld [vmem:[#allocation6 + $0x150] sm:$0xf]
    %v183 = vld [vmem:[#allocation6 + $0x154] sm:$0xf]
    %v184 = vld [vmem:[#allocation6 + $0x158] sm:$0xf]
    %v185 = vld [vmem:[#allocation6 + $0x15c] sm:$0xf]
    %v186 = vld [vmem:[#allocation6 + $0x160] sm:$0xf]
    %v187 = vld [vmem:[#allocation6 + $0x164] sm:$0xf]
    %v188 = vld [vmem:[#allocation6 + $0x168] sm:$0xf]
    %v189 = vld [vmem:[#allocation6 + $0x16c] sm:$0xf]
    %v190 = vld [vmem:[#allocation6 + $0x170] sm:$0xf]
    %v191 = vld [vmem:[#allocation6 + $0x174] sm:$0xf]
    %v192 = vld [vmem:[#allocation6 + $0x178] sm:$0xf]
    %v193 = vld [vmem:[#allocation6 + $0x17c] sm:$0xf]
    %v194 = vld [vmem:[#allocation6 + $0x180] sm:$0xf]
    %v195 = vld [vmem:[#allocation6 + $0x184] sm:$0xf]
    %v196 = vld [vmem:[#allocation6 + $0x188] sm:$0xf]
    %v197 = vld [vmem:[#allocation6 + $0x18c] sm:$0xf]
    %v198 = vld [vmem:[#allocation6 + $0x190] sm:$0xf]
    %v199 = vld [vmem:[#allocation6 + $0x194] sm:$0xf]
    %v200 = vld [vmem:[#allocation6 + $0x198] sm:$0xf]
    %v201 = vld [vmem:[#allocation6 + $0x19c] sm:$0xf]
    %v202 = vld [vmem:[#allocation6 + $0x1a0] sm:$0xf]
    %v203 = vld [vmem:[#allocation6 + $0x1a4] sm:$0xf]
    %v204 = vld [vmem:[#allocation6 + $0x1a8] sm:$0xf]
    %v205 = vld [vmem:[#allocation6 + $0x1ac] sm:$0xf]
    %v206 = vld [vmem:[#allocation6 + $0x1b0] sm:$0xf]
    %v207 = vld [vmem:[#allocation6 + $0x1b4] sm:$0xf]
    %v208 = vld [vmem:[#allocation6 + $0x1b8] sm:$0xf]
    %v209 = vld [vmem:[#allocation6 + $0x1bc] sm:$0xf]
    %v210 = vld [vmem:[#allocation6 + $0x1c0] sm:$0xf]
    %v211 = vld [vmem:[#allocation6 + $0x1c4] sm:$0xf]
    %v212 = vld [vmem:[#allocation6 + $0x1c8] sm:$0xf]
    %v213 = vld [vmem:[#allocation6 + $0x1cc] sm:$0xf]
    %v214 = vld [vmem:[#allocation6 + $0x1d0] sm:$0xf]
    %v215 = vld [vmem:[#allocation6 + $0x1d4] sm:$0xf]
    %v216 = vld [vmem:[#allocation6 + $0x1d8] sm:$0xf]
    %v217 = vld [vmem:[#allocation6 + $0x1dc] sm:$0xf]
    %v218 = vld [vmem:[#allocation6 + $0x1e0] sm:$0xf]
    %v219 = vld [vmem:[#allocation6 + $0x1e4] sm:$0xf]
    %v220 = vld [vmem:[#allocation6 + $0x1e8] sm:$0xf]
    %v221 = vld [vmem:[#allocation6 + $0x1ec] sm:$0xf]
    %v222 = vld [vmem:[#allocation6 + $0x1f0] sm:$0xf]
    %v223 = vld [vmem:[#allocation6 + $0x1f4] sm:$0xf]
    %v224 = vld [vmem:[#allocation6 + $0x1f8] sm:$0xf]
    %v225 = vld [vmem:[#allocation6 + $0x1fc] sm:$0xf]
    %v226 = vld [vmem:[#allocation6 + $0x200] sm:$0xf]
    %v227 = vld [vmem:[#allocation6 + $0x204] sm:$0xf]
    %v228 = vld [vmem:[#allocation6 + $0x208] sm:$0xf]
    %v229 = vld [vmem:[#allocation6 + $0x20c] sm:$0xf]
    %v230 = vld [vmem:[#allocation6 + $0x210] sm:$0xf]
    %v231 = vld [vmem:[#allocation6 + $0x214] sm:$0xf]
    %v232 = vld [vmem:[#allocation6 + $0x218] sm:$0xf]
    %v233 = vld [vmem:[#allocation6 + $0x21c] sm:$0xf]
    %v234 = vld [vmem:[#allocation6 + $0x220] sm:$0xf]
    %v235 = vld [vmem:[#allocation6 + $0x224] sm:$0xf]
    %v236 = vld [vmem:[#allocation6 + $0x228] sm:$0xf]
    %v237 = vld [vmem:[#allocation6 + $0x22c] sm:$0xf]
    %v238 = vld [vmem:[#allocation6 + $0x230] sm:$0xf]
    %v239 = vld [vmem:[#allocation6 + $0x234] sm:$0xf]
    %v240 = vld [vmem:[#allocation6 + $0x238] sm:$0xf]
    %v241 = vld [vmem:[#allocation6 + $0x23c] sm:$0xf]
    %v242 = vld [vmem:[#allocation6 + $0x240] sm:$0xf]
    %v243 = vld [vmem:[#allocation6 + $0x244] sm:$0xf]
    %v244 = vld [vmem:[#allocation6 + $0x248] sm:$0xf]
    %v245 = vld [vmem:[#allocation6 + $0x24c] sm:$0xf]
    %v246 = vld [vmem:[#allocation6 + $0x250] sm:$0xf]
    %v247 = vld [vmem:[#allocation6 + $0x254] sm:$0xf]
    %v248 = vld [vmem:[#allocation6 + $0x258] sm:$0xf]
    %v249 = vld [vmem:[#allocation6 + $0x25c] sm:$0xf]
    %v250 = vld [vmem:[#allocation6 + $0x260] sm:$0xf]
    %v251 = vld [vmem:[#allocation6 + $0x264] sm:$0xf]
    %v252 = vld [vmem:[#allocation6 + $0x268] sm:$0xf]
    %v253 = vld [vmem:[#allocation6 + $0x26c] sm:$0xf]
    %v254 = vld [vmem:[#allocation6 + $0x270] sm:$0xf]
    %v255 = vld [vmem:[#allocation6 + $0x274] sm:$0xf]
    %v256 = vld [vmem:[#allocation6 + $0x278] sm:$0xf]
    %v257 = vld [vmem:[#allocation6 + $0x27c] sm:$0xf]
    %v258 = vld [vmem:[#allocation6 + $0x280] sm:$0xf]
    %v259 = vld [vmem:[#allocation6 + $0x284] sm:$0xf]
    %v260 = vld [vmem:[#allocation6 + $0x288] sm:$0xf]
    %v261 = vld [vmem:[#allocation6 + $0x28c] sm:$0xf]
    %v262 = vld [vmem:[#allocation6 + $0x290] sm:$0xf]
    %v263 = vld [vmem:[#allocation6 + $0x294] sm:$0xf]
    %v264 = vld [vmem:[#allocation6 + $0x298] sm:$0xf]
    %v265 = vld [vmem:[#allocation6 + $0x29c] sm:$0xf]
    %v266 = vld [vmem:[#allocation6 + $0x2a0] sm:$0xf]
    %v267 = vld [vmem:[#allocation6 + $0x2a4] sm:$0xf]
    %v268 = vld [vmem:[#allocation6 + $0x2a8] sm:$0xf]
    %v269 = vld [vmem:[#allocation6 + $0x2ac] sm:$0xf]
    %v270 = vld [vmem:[#allocation6 + $0x2b0] sm:$0xf]
    %v271 = vld [vmem:[#allocation6 + $0x2b4] sm:$0xf]
    %v272 = vld [vmem:[#allocation6 + $0x2b8] sm:$0xf]
    %v273 = vld [vmem:[#allocation6 + $0x2bc] sm:$0xf]
    %v274 = vld [vmem:[#allocation6 + $0x2c0] sm:$0xf]
    %v275 = vld [vmem:[#allocation6 + $0x2c4] sm:$0xf]
    %v276 = vld [vmem:[#allocation6 + $0x2c8] sm:$0xf]
    %v277 = vld [vmem:[#allocation6 + $0x2cc] sm:$0xf]
    %v278 = vld [vmem:[#allocation6 + $0x2d0] sm:$0xf]
    %v279 = vld [vmem:[#allocation6 + $0x2d4] sm:$0xf]
    %v280 = vld [vmem:[#allocation6 + $0x2d8] sm:$0xf]
    %v281 = vld [vmem:[#allocation6 + $0x2dc] sm:$0xf]
    %v282 = vld [vmem:[#allocation6 + $0x2e0] sm:$0xf]
    %v283 = vld [vmem:[#allocation6 + $0x2e4] sm:$0xf]
    %v284 = vld [vmem:[#allocation6 + $0x2e8] sm:$0xf]
    %v285 = vld [vmem:[#allocation6 + $0x2ec] sm:$0xf]
    %v286 = vld [vmem:[#allocation6 + $0x2f0] sm:$0xf]
    %v287 = vld [vmem:[#allocation6 + $0x2f4] sm:$0xf]
    %v288 = vld [vmem:[#allocation6 + $0x2f8] sm:$0xf]
    %v289 = vld [vmem:[#allocation6 + $0x2fc] sm:$0xf]
    %v290 = vld [vmem:[#allocation6 + $0x300] sm:$0xf]
    %v291 = vld [vmem:[#allocation6 + $0x304] sm:$0xf]
    %v292 = vld [vmem:[#allocation6 + $0x308] sm:$0xf]
    %v293 = vld [vmem:[#allocation6 + $0x30c] sm:$0xf]
    %v294 = vld [vmem:[#allocation6 + $0x310] sm:$0xf]
    %v295 = vld [vmem:[#allocation6 + $0x314] sm:$0xf]
    %v296 = vld [vmem:[#allocation6 + $0x318] sm:$0xf]
    %v297 = vld [vmem:[#allocation6 + $0x31c] sm:$0xf]
    %v298 = vld [vmem:[#allocation6 + $0x320] sm:$0xf]
    %v299 = vld [vmem:[#allocation6 + $0x324] sm:$0xf]
    %v300 = vld [vmem:[#allocation6 + $0x328] sm:$0xf]
    %v301 = vld [vmem:[#allocation6 + $0x32c] sm:$0xf]
    %v302 = vld [vmem:[#allocation6 + $0x330] sm:$0xf]
    %v303 = vld [vmem:[#allocation6 + $0x334] sm:$0xf]
    %v304 = vld [vmem:[#allocation6 + $0x338] sm:$0xf]
    %v305 = vld [vmem:[#allocation6 + $0x33c] sm:$0xf]
    %v306 = vld [vmem:[#allocation6 + $0x340] sm:$0xf]
    %v307 = vld [vmem:[#allocation6 + $0x344] sm:$0xf]
    %v308 = vld [vmem:[#allocation6 + $0x348] sm:$0xf]
    %v309 = vld [vmem:[#allocation6 + $0x34c] sm:$0xf]
    %v310 = vld [vmem:[#allocation6 + $0x350] sm:$0xf]
    %v311 = vld [vmem:[#allocation6 + $0x354] sm:$0xf]
    %v312 = vld [vmem:[#allocation6 + $0x358] sm:$0xf]
    %v313 = vld [vmem:[#allocation6 + $0x35c] sm:$0xf]
    %v314 = vld [vmem:[#allocation6 + $0x360] sm:$0xf]
    %v315 = vld [vmem:[#allocation6 + $0x364] sm:$0xf]
    %v316 = vld [vmem:[#allocation6 + $0x368] sm:$0xf]
    %v317 = vld [vmem:[#allocation6 + $0x36c] sm:$0xf]
    %v318 = vld [vmem:[#allocation6 + $0x370] sm:$0xf]
    %v319 = vld [vmem:[#allocation6 + $0x374] sm:$0xf]
    %v320 = vld [vmem:[#allocation6 + $0x378] sm:$0xf]
    %v321 = vld [vmem:[#allocation6 + $0x37c] sm:$0xf]
    %v322 = vld [vmem:[#allocation6 + $0x380] sm:$0xf]
    %v323 = vld [vmem:[#allocation6 + $0x384] sm:$0xf]
    %v324 = vld [vmem:[#allocation6 + $0x388] sm:$0xf]
    %v325 = vld [vmem:[#allocation6 + $0x38c] sm:$0xf]
    %v326 = vld [vmem:[#allocation6 + $0x390] sm:$0xf]
    %v327 = vld [vmem:[#allocation6 + $0x394] sm:$0xf]
    %v328 = vld [vmem:[#allocation6 + $0x398] sm:$0xf]
    %v329 = vld [vmem:[#allocation6 + $0x39c] sm:$0xf]
    %v330 = vld [vmem:[#allocation6 + $0x3a0] sm:$0xf]
    %v331 = vld [vmem:[#allocation6 + $0x3a4] sm:$0xf]
    %v332 = vld [vmem:[#allocation6 + $0x3a8] sm:$0xf]
    %v333 = vld [vmem:[#allocation6 + $0x3ac] sm:$0xf]
    %v334 = vld [vmem:[#allocation6 + $0x3b0] sm:$0xf]
    %v335 = vld [vmem:[#allocation6 + $0x3b4] sm:$0xf]
    %v336 = vld [vmem:[#allocation6 + $0x3b8] sm:$0xf]
    %v337 = vld [vmem:[#allocation6 + $0x3bc] sm:$0xf]
    %v338 = vld [vmem:[#allocation6 + $0x3c0] sm:$0xf]
    %v339 = vld [vmem:[#allocation6 + $0x3c4] sm:$0xf]
    %v340 = vld [vmem:[#allocation6 + $0x3c8] sm:$0xf]
    %v341 = vld [vmem:[#allocation6 + $0x3cc] sm:$0xf]
    %v342 = vld [vmem:[#allocation6 + $0x3d0] sm:$0xf]
    %v343 = vld [vmem:[#allocation6 + $0x3d4] sm:$0xf]
    %v344 = vld [vmem:[#allocation6 + $0x3d8] sm:$0xf]
    %v345 = vld [vmem:[#allocation6 + $0x3dc] sm:$0xf]
    %v346 = vld [vmem:[#allocation6 + $0x3e0] sm:$0xf]
    %v347 = vld [vmem:[#allocation6 + $0x3e4] sm:$0xf]
    %v348 = vld [vmem:[#allocation6 + $0x3e8] sm:$0xf]
    %v349 = vld [vmem:[#allocation6 + $0x3ec] sm:$0xf]
    %v350 = vld [vmem:[#allocation6 + $0x3f0] sm:$0xf]
    %v351 = vld [vmem:[#allocation6 + $0x3f4] sm:$0xf]
    %v352 = vld [vmem:[#allocation6 + $0x3f8] sm:$0xf]
    %v353 = vld [vmem:[#allocation6 + $0x3fc] sm:$0xf]
    %v354 = vld [vmem:[%s2] sm:$0x1]
    %v356 = vlaneseq
    %v357 = vshrl.u32 %v356, 7
    %v358 = vsub.s32 0, %v357
    %v359 = vrot.slane %v354, %v358
    %v617 = vunpack.c.l.b16 %v98
    %v618 = vunpack.c.l.b16 %v99
    %v619 = vunpack.c.l.b16 %v100
    %v620 = vunpack.c.l.b16 %v101
    %v621 = vunpack.c.l.b16 %v102
    %v622 = vunpack.c.l.b16 %v103
    %v623 = vunpack.c.l.b16 %v104
    %v624 = vunpack.c.l.b16 %v105
    %v625 = vunpack.c.l.b16 %v106
    %v626 = vunpack.c.l.b16 %v107
    %v627 = vunpack.c.l.b16 %v108
    %v628 = vunpack.c.l.b16 %v109
    %v629 = vunpack.c.l.b16 %v110
    %v630 = vunpack.c.l.b16 %v111
    %v631 = vunpack.c.l.b16 %v112
    %v632 = vunpack.c.l.b16 %v113
    %v633 = vunpack.c.l.b16 %v114
    %v634 = vunpack.c.l.b16 %v115
    %v635 = vunpack.c.l.b16 %v116
    %v636 = vunpack.c.l.b16 %v117
    %v637 = vunpack.c.l.b16 %v118
    %v638 = vunpack.c.l.b16 %v119
    %v639 = vunpack.c.l.b16 %v120
    %v640 = vunpack.c.l.b16 %v121
    %v641 = vunpack.c.l.b16 %v122
    %v642 = vunpack.c.l.b16 %v123
    %v643 = vunpack.c.l.b16 %v124
    %v644 = vunpack.c.l.b16 %v125
    %v645 = vunpack.c.l.b16 %v126
    %v646 = vunpack.c.l.b16 %v127
    %v647 = vunpack.c.l.b16 %v128
    %v648 = vunpack.c.l.b16 %v129
    %v649 = vunpack.c.l.b16 %v130
    %v650 = vunpack.c.l.b16 %v131
    %v651 = vunpack.c.l.b16 %v132
    %v652 = vunpack.c.l.b16 %v133
    %v653 = vunpack.c.l.b16 %v134
    %v654 = vunpack.c.l.b16 %v135
    %v655 = vunpack.c.l.b16 %v136
    %v656 = vunpack.c.l.b16 %v137
    %v657 = vunpack.c.l.b16 %v138
    %v658 = vunpack.c.l.b16 %v139
    %v659 = vunpack.c.l.b16 %v140
    %v660 = vunpack.c.l.b16 %v141
    %v661 = vunpack.c.l.b16 %v142
    %v662 = vunpack.c.l.b16 %v143
    %v663 = vunpack.c.l.b16 %v144
    %v664 = vunpack.c.l.b16 %v145
    %v665 = vunpack.c.l.b16 %v146
    %v666 = vunpack.c.l.b16 %v147
    %v667 = vunpack.c.l.b16 %v148
    %v668 = vunpack.c.l.b16 %v149
    %v669 = vunpack.c.l.b16 %v150
    %v670 = vunpack.c.l.b16 %v151
    %v671 = vunpack.c.l.b16 %v152
    %v672 = vunpack.c.l.b16 %v153
    %v673 = vunpack.c.l.b16 %v154
    %v674 = vunpack.c.l.b16 %v155
    %v675 = vunpack.c.l.b16 %v156
    %v676 = vunpack.c.l.b16 %v157
    %v677 = vunpack.c.l.b16 %v158
    %v678 = vunpack.c.l.b16 %v159
    %v679 = vunpack.c.l.b16 %v160
    %v680 = vunpack.c.l.b16 %v161
    %v681 = vunpack.c.l.b16 %v162
    %v682 = vunpack.c.l.b16 %v163
    %v683 = vunpack.c.l.b16 %v164
    %v684 = vunpack.c.l.b16 %v165
    %v685 = vunpack.c.l.b16 %v166
    %v686 = vunpack.c.l.b16 %v167
    %v687 = vunpack.c.l.b16 %v168
    %v688 = vunpack.c.l.b16 %v169
    %v689 = vunpack.c.l.b16 %v170
    %v690 = vunpack.c.l.b16 %v171
    %v691 = vunpack.c.l.b16 %v172
    %v692 = vunpack.c.l.b16 %v173
    %v693 = vunpack.c.l.b16 %v174
    %v694 = vunpack.c.l.b16 %v175
    %v695 = vunpack.c.l.b16 %v176
    %v696 = vunpack.c.l.b16 %v177
    %v697 = vunpack.c.l.b16 %v178
    %v698 = vunpack.c.l.b16 %v179
    %v699 = vunpack.c.l.b16 %v180
    %v700 = vunpack.c.l.b16 %v181
    %v701 = vunpack.c.l.b16 %v182
    %v702 = vunpack.c.l.b16 %v183
    %v703 = vunpack.c.l.b16 %v184
    %v704 = vunpack.c.l.b16 %v185
    %v705 = vunpack.c.l.b16 %v186
    %v706 = vunpack.c.l.b16 %v187
    %v707 = vunpack.c.l.b16 %v188
    %v708 = vunpack.c.l.b16 %v189
    %v709 = vunpack.c.l.b16 %v190
    %v710 = vunpack.c.l.b16 %v191
    %v711 = vunpack.c.l.b16 %v192
    %v712 = vunpack.c.l.b16 %v193
    %v713 = vunpack.c.l.b16 %v194
    %v714 = vunpack.c.l.b16 %v195
    %v715 = vunpack.c.l.b16 %v196
    %v716 = vunpack.c.l.b16 %v197
    %v717 = vunpack.c.l.b16 %v198
    %v718 = vunpack.c.l.b16 %v199
    %v719 = vunpack.c.l.b16 %v200
    %v720 = vunpack.c.l.b16 %v201
    %v721 = vunpack.c.l.b16 %v202
    %v722 = vunpack.c.l.b16 %v203
    %v723 = vunpack.c.l.b16 %v204
    %v724 = vunpack.c.l.b16 %v205
    %v725 = vunpack.c.l.b16 %v206
    %v726 = vunpack.c.l.b16 %v207
    %v727 = vunpack.c.l.b16 %v208
    %v728 = vunpack.c.l.b16 %v209
    %v729 = vunpack.c.l.b16 %v210
    %v730 = vunpack.c.l.b16 %v211
    %v731 = vunpack.c.l.b16 %v212
    %v732 = vunpack.c.l.b16 %v213
    %v733 = vunpack.c.l.b16 %v214
    %v734 = vunpack.c.l.b16 %v215
    %v735 = vunpack.c.l.b16 %v216
    %v736 = vunpack.c.l.b16 %v217
    %v737 = vunpack.c.l.b16 %v218
    %v738 = vunpack.c.l.b16 %v219
    %v739 = vunpack.c.l.b16 %v220
    %v740 = vunpack.c.l.b16 %v221
    %v741 = vunpack.c.l.b16 %v222
    %v742 = vunpack.c.l.b16 %v223
    %v743 = vunpack.c.l.b16 %v224
    %v744 = vunpack.c.l.b16 %v225
    %v745 = vunpack.c.l.b16 %v226
    %v746 = vunpack.c.l.b16 %v227
    %v747 = vunpack.c.l.b16 %v228
    %v748 = vunpack.c.l.b16 %v229
    %v749 = vunpack.c.l.b16 %v230
    %v750 = vunpack.c.l.b16 %v231
    %v751 = vunpack.c.l.b16 %v232
    %v752 = vunpack.c.l.b16 %v233
    %v753 = vunpack.c.l.b16 %v234
    %v754 = vunpack.c.l.b16 %v235
    %v755 = vunpack.c.l.b16 %v236
    %v756 = vunpack.c.l.b16 %v237
    %v757 = vunpack.c.l.b16 %v238
    %v758 = vunpack.c.l.b16 %v239
    %v759 = vunpack.c.l.b16 %v240
    %v760 = vunpack.c.l.b16 %v241
    %v761 = vunpack.c.l.b16 %v242
    %v762 = vunpack.c.l.b16 %v243
    %v763 = vunpack.c.l.b16 %v244
    %v764 = vunpack.c.l.b16 %v245
    %v765 = vunpack.c.l.b16 %v246
    %v766 = vunpack.c.l.b16 %v247
    %v767 = vunpack.c.l.b16 %v248
    %v768 = vunpack.c.l.b16 %v249
    %v769 = vunpack.c.l.b16 %v250
    %v770 = vunpack.c.l.b16 %v251
    %v771 = vunpack.c.l.b16 %v252
    %v772 = vunpack.c.l.b16 %v253
    %v773 = vunpack.c.l.b16 %v254
    %v774 = vunpack.c.l.b16 %v255
    %v775 = vunpack.c.l.b16 %v256
    %v776 = vunpack.c.l.b16 %v257
    %v777 = vunpack.c.l.b16 %v258
    %v778 = vunpack.c.l.b16 %v259
    %v779 = vunpack.c.l.b16 %v260
    %v780 = vunpack.c.l.b16 %v261
    %v781 = vunpack.c.l.b16 %v262
    %v782 = vunpack.c.l.b16 %v263
    %v783 = vunpack.c.l.b16 %v264
    %v784 = vunpack.c.l.b16 %v265
    %v785 = vunpack.c.l.b16 %v266
    %v786 = vunpack.c.l.b16 %v267
    %v787 = vunpack.c.l.b16 %v268
    %v788 = vunpack.c.l.b16 %v269
    %v789 = vunpack.c.l.b16 %v270
    %v790 = vunpack.c.l.b16 %v271
    %v791 = vunpack.c.l.b16 %v272
    %v792 = vunpack.c.l.b16 %v273
    %v793 = vunpack.c.l.b16 %v274
    %v794 = vunpack.c.l.b16 %v275
    %v795 = vunpack.c.l.b16 %v276
    %v796 = vunpack.c.l.b16 %v277
    %v797 = vunpack.c.l.b16 %v278
    %v798 = vunpack.c.l.b16 %v279
    %v799 = vunpack.c.l.b16 %v280
    %v800 = vunpack.c.l.b16 %v281
    %v801 = vunpack.c.l.b16 %v282
    %v802 = vunpack.c.l.b16 %v283
    %v803 = vunpack.c.l.b16 %v284
    %v804 = vunpack.c.l.b16 %v285
    %v805 = vunpack.c.l.b16 %v286
    %v806 = vunpack.c.l.b16 %v287
    %v807 = vunpack.c.l.b16 %v288
    %v808 = vunpack.c.l.b16 %v289
    %v809 = vunpack.c.l.b16 %v290
    %v810 = vunpack.c.l.b16 %v291
    %v811 = vunpack.c.l.b16 %v292
    %v812 = vunpack.c.l.b16 %v293
    %v813 = vunpack.c.l.b16 %v294
    %v814 = vunpack.c.l.b16 %v295
    %v815 = vunpack.c.l.b16 %v296
    %v816 = vunpack.c.l.b16 %v297
    %v817 = vunpack.c.l.b16 %v298
    %v818 = vunpack.c.l.b16 %v299
    %v819 = vunpack.c.l.b16 %v300
    %v820 = vunpack.c.l.b16 %v301
    %v821 = vunpack.c.l.b16 %v302
    %v822 = vunpack.c.l.b16 %v303
    %v823 = vunpack.c.l.b16 %v304
    %v824 = vunpack.c.l.b16 %v305
    %v825 = vunpack.c.l.b16 %v306
    %v826 = vunpack.c.l.b16 %v307
    %v827 = vunpack.c.l.b16 %v308
    %v828 = vunpack.c.l.b16 %v309
    %v829 = vunpack.c.l.b16 %v310
    %v830 = vunpack.c.l.b16 %v311
    %v831 = vunpack.c.l.b16 %v312
    %v832 = vunpack.c.l.b16 %v313
    %v833 = vunpack.c.l.b16 %v314
    %v834 = vunpack.c.l.b16 %v315
    %v835 = vunpack.c.l.b16 %v316
    %v836 = vunpack.c.l.b16 %v317
    %v837 = vunpack.c.l.b16 %v318
    %v838 = vunpack.c.l.b16 %v319
    %v839 = vunpack.c.l.b16 %v320
    %v840 = vunpack.c.l.b16 %v321
    %v841 = vunpack.c.l.b16 %v322
    %v842 = vunpack.c.l.b16 %v323
    %v843 = vunpack.c.l.b16 %v324
    %v844 = vunpack.c.l.b16 %v325
    %v845 = vunpack.c.l.b16 %v326
    %v846 = vunpack.c.l.b16 %v327
    %v847 = vunpack.c.l.b16 %v328
    %v848 = vunpack.c.l.b16 %v329
    %v849 = vunpack.c.l.b16 %v330
    %v850 = vunpack.c.l.b16 %v331
    %v851 = vunpack.c.l.b16 %v332
    %v852 = vunpack.c.l.b16 %v333
    %v853 = vunpack.c.l.b16 %v334
    %v854 = vunpack.c.l.b16 %v335
    %v855 = vunpack.c.l.b16 %v336
    %v856 = vunpack.c.l.b16 %v337
    %v857 = vunpack.c.l.b16 %v338
    %v858 = vunpack.c.l.b16 %v339
    %v859 = vunpack.c.l.b16 %v340
    %v860 = vunpack.c.l.b16 %v341
    %v861 = vunpack.c.l.b16 %v342
    %v862 = vunpack.c.l.b16 %v343
    %v863 = vunpack.c.l.b16 %v344
    %v864 = vunpack.c.l.b16 %v345
    %v865 = vunpack.c.l.b16 %v346
    %v866 = vunpack.c.l.b16 %v347
    %v867 = vunpack.c.l.b16 %v348
    %v868 = vunpack.c.l.b16 %v349
    %v869 = vunpack.c.l.b16 %v350
    %v870 = vunpack.c.l.b16 %v351
    %v871 = vunpack.c.l.b16 %v352
    %v872 = vunpack.c.l.b16 %v353
    %v873 = vpack.c.b16 %v618, %v617
    %v874 = vpack.c.b16 %v620, %v619
    %v875 = vpack.c.b16 %v622, %v621
    %v876 = vpack.c.b16 %v624, %v623
    %v877 = vpack.c.b16 %v626, %v625
    %v878 = vpack.c.b16 %v628, %v627
    %v879 = vpack.c.b16 %v630, %v629
    %v880 = vpack.c.b16 %v632, %v631
    %v881 = vpack.c.b16 %v634, %v633
    %v882 = vpack.c.b16 %v636, %v635
    %v883 = vpack.c.b16 %v638, %v637
    %v884 = vpack.c.b16 %v640, %v639
    %v885 = vpack.c.b16 %v642, %v641
    %v886 = vpack.c.b16 %v644, %v643
    %v887 = vpack.c.b16 %v646, %v645
    %v888 = vpack.c.b16 %v648, %v647
    %v889 = vpack.c.b16 %v650, %v649
    %v890 = vpack.c.b16 %v652, %v651
    %v891 = vpack.c.b16 %v654, %v653
    %v892 = vpack.c.b16 %v656, %v655
    %v893 = vpack.c.b16 %v658, %v657
    %v894 = vpack.c.b16 %v660, %v659
    %v895 = vpack.c.b16 %v662, %v661
    %v896 = vpack.c.b16 %v664, %v663
    %v897 = vpack.c.b16 %v666, %v665
    %v898 = vpack.c.b16 %v668, %v667
    %v899 = vpack.c.b16 %v670, %v669
    %v900 = vpack.c.b16 %v672, %v671
    %v901 = vpack.c.b16 %v674, %v673
    %v902 = vpack.c.b16 %v676, %v675
    %v903 = vpack.c.b16 %v678, %v677
    %v904 = vpack.c.b16 %v680, %v679
    %v905 = vpack.c.b16 %v682, %v681
    %v906 = vpack.c.b16 %v684, %v683
    %v907 = vpack.c.b16 %v686, %v685
    %v908 = vpack.c.b16 %v688, %v687
    %v909 = vpack.c.b16 %v690, %v689
    %v910 = vpack.c.b16 %v692, %v691
    %v911 = vpack.c.b16 %v694, %v693
    %v912 = vpack.c.b16 %v696, %v695
    %v913 = vpack.c.b16 %v698, %v697
    %v914 = vpack.c.b16 %v700, %v699
    %v915 = vpack.c.b16 %v702, %v701
    %v916 = vpack.c.b16 %v704, %v703
    %v917 = vpack.c.b16 %v706, %v705
    %v918 = vpack.c.b16 %v708, %v707
    %v919 = vpack.c.b16 %v710, %v709
    %v920 = vpack.c.b16 %v712, %v711
    %v921 = vpack.c.b16 %v714, %v713
    %v922 = vpack.c.b16 %v716, %v715
    %v923 = vpack.c.b16 %v718, %v717
    %v924 = vpack.c.b16 %v720, %v719
    %v925 = vpack.c.b16 %v722, %v721
    %v926 = vpack.c.b16 %v724, %v723
    %v927 = vpack.c.b16 %v726, %v725
    %v928 = vpack.c.b16 %v728, %v727
    %v929 = vpack.c.b16 %v730, %v729
    %v930 = vpack.c.b16 %v732, %v731
    %v931 = vpack.c.b16 %v734, %v733
    %v932 = vpack.c.b16 %v736, %v735
    %v933 = vpack.c.b16 %v738, %v737
    %v934 = vpack.c.b16 %v740, %v739
    %v935 = vpack.c.b16 %v742, %v741
    %v936 = vpack.c.b16 %v744, %v743
    %v937 = vpack.c.b16 %v746, %v745
    %v938 = vpack.c.b16 %v748, %v747
    %v939 = vpack.c.b16 %v750, %v749
    %v940 = vpack.c.b16 %v752, %v751
    %v941 = vpack.c.b16 %v754, %v753
    %v942 = vpack.c.b16 %v756, %v755
    %v943 = vpack.c.b16 %v758, %v757
    %v944 = vpack.c.b16 %v760, %v759
    %v945 = vpack.c.b16 %v762, %v761
    %v946 = vpack.c.b16 %v764, %v763
    %v947 = vpack.c.b16 %v766, %v765
    %v948 = vpack.c.b16 %v768, %v767
    %v949 = vpack.c.b16 %v770, %v769
    %v950 = vpack.c.b16 %v772, %v771
    %v951 = vpack.c.b16 %v774, %v773
    %v952 = vpack.c.b16 %v776, %v775
    %v953 = vpack.c.b16 %v778, %v777
    %v954 = vpack.c.b16 %v780, %v779
    %v955 = vpack.c.b16 %v782, %v781
    %v956 = vpack.c.b16 %v784, %v783
    %v957 = vpack.c.b16 %v786, %v785
    %v958 = vpack.c.b16 %v788, %v787
    %v959 = vpack.c.b16 %v790, %v789
    %v960 = vpack.c.b16 %v792, %v791
    %v961 = vpack.c.b16 %v794, %v793
    %v962 = vpack.c.b16 %v796, %v795
    %v963 = vpack.c.b16 %v798, %v797
    %v964 = vpack.c.b16 %v800, %v799
    %v965 = vpack.c.b16 %v802, %v801
    %v966 = vpack.c.b16 %v804, %v803
    %v967 = vpack.c.b16 %v806, %v805
    %v968 = vpack.c.b16 %v808, %v807
    %v969 = vpack.c.b16 %v810, %v809
    %v970 = vpack.c.b16 %v812, %v811
    %v971 = vpack.c.b16 %v814, %v813
    %v972 = vpack.c.b16 %v816, %v815
    %v973 = vpack.c.b16 %v818, %v817
    %v974 = vpack.c.b16 %v820, %v819
    %v975 = vpack.c.b16 %v822, %v821
    %v976 = vpack.c.b16 %v824, %v823
    %v977 = vpack.c.b16 %v826, %v825
    %v978 = vpack.c.b16 %v828, %v827
    %v979 = vpack.c.b16 %v830, %v829
    %v980 = vpack.c.b16 %v832, %v831
    %v981 = vpack.c.b16 %v834, %v833
    %v982 = vpack.c.b16 %v836, %v835
    %v983 = vpack.c.b16 %v838, %v837
    %v984 = vpack.c.b16 %v840, %v839
    %v985 = vpack.c.b16 %v842, %v841
    %v986 = vpack.c.b16 %v844, %v843
    %v987 = vpack.c.b16 %v846, %v845
    %v988 = vpack.c.b16 %v848, %v847
    %v989 = vpack.c.b16 %v850, %v849
    %v990 = vpack.c.b16 %v852, %v851
    %v991 = vpack.c.b16 %v854, %v853
    %v992 = vpack.c.b16 %v856, %v855
    %v993 = vpack.c.b16 %v858, %v857
    %v994 = vpack.c.b16 %v860, %v859
    %v995 = vpack.c.b16 %v862, %v861
    %v996 = vpack.c.b16 %v864, %v863
    %v997 = vpack.c.b16 %v866, %v865
    %v998 = vpack.c.b16 %v868, %v867
    %v999 = vpack.c.b16 %v870, %v869
    %v1000 = vpack.c.b16 %v872, %v871
    %1129 = vmatprep.subr.bf16.mxu0 0
    %1130 = vmatpush1.bf16.msra.mxu0 %v880
    %1131 = vmatprep.subr.bf16.mxu0 0
    %1132 = vmatpush1.bf16.msra.mxu0 %v879
    %1133 = vmatprep.subr.bf16.mxu0 0
    %1134 = vmatpush1.bf16.msra.mxu0 %v878
    %1135 = vmatprep.subr.bf16.mxu0 0
    %1136 = vmatpush1.bf16.msra.mxu0 %v877
    %1137 = vmatprep.subr.bf16.mxu0 0
    %1138 = vmatpush1.bf16.msra.mxu0 %v876
    %1139 = vmatprep.subr.bf16.mxu0 0
    %1140 = vmatpush1.bf16.msra.mxu0 %v875
    %1141 = vmatprep.subr.bf16.mxu0 0
    %1142 = vmatpush1.bf16.msra.mxu0 %v874
    %1143 = vmatprep.subr.bf16.mxu0 0
    %1144 = vmatpush1.bf16.msra.mxu0 %v873
    %1145 = vmatprep.subr.bf16.mxu0 0
    %1146 = vmatpush2.bf16.msra.mxu0 %v888
    %1147 = vmatprep.subr.bf16.mxu0 0
    %1148 = vmatpush2.bf16.msra.mxu0 %v887
    %1149 = vmatprep.subr.bf16.mxu0 0
    %1150 = vmatpush2.bf16.msra.mxu0 %v886
    %1151 = vmatprep.subr.bf16.mxu0 0
    %1152 = vmatpush2.bf16.msra.mxu0 %v885
    %1153 = vmatprep.subr.bf16.mxu0 0
    %1154 = vmatpush2.bf16.msra.mxu0 %v884
    %1155 = vmatprep.subr.bf16.mxu0 0
    %1156 = vmatpush2.bf16.msra.mxu0 %v883
    %1157 = vmatprep.subr.bf16.mxu0 0
    %1158 = vmatpush2.bf16.msra.mxu0 %v882
    %1159 = vmatprep.subr.bf16.mxu0 0
    %1160 = vmatpush2.bf16.msra.mxu0 %v881
    %1161 = vmatprep.mubr.bf16.mxu0 %v83
    %1162 = vmatmul.mubr.bf16.gmra.mxu0 %v82
    %v1163 = vpop.f32.mrf.mxu0
    %v1164 = vadd.f32 %v359, %v1163
    %v1165 = vpop.f32.mrf.mxu0
    %v1166 = vpop.f32.mrf.mxu0
    %v1167 = vpop.f32.mrf.mxu0
    %1168 = vdwg.mxu0
    %1169 = vmatprep.subr.bf16.mxu0 0
    %1170 = vmatpush1.bf16.msra.mxu0 %v896
    %1171 = vmatprep.subr.bf16.mxu0 0
    %1172 = vmatpush1.bf16.msra.mxu0 %v895
    %1173 = vmatprep.subr.bf16.mxu0 0
    %1174 = vmatpush1.bf16.msra.mxu0 %v894
    %1175 = vmatprep.subr.bf16.mxu0 0
    %1176 = vmatpush1.bf16.msra.mxu0 %v893
    %1177 = vmatprep.subr.bf16.mxu0 0
    %1178 = vmatpush1.bf16.msra.mxu0 %v892
    %1179 = vmatprep.subr.bf16.mxu0 0
    %1180 = vmatpush1.bf16.msra.mxu0 %v891
    %1181 = vmatprep.subr.bf16.mxu0 0
    %1182 = vmatpush1.bf16.msra.mxu0 %v890
    %1183 = vmatprep.subr.bf16.mxu0 0
    %1184 = vmatpush1.bf16.msra.mxu0 %v889
    %1185 = vmatprep.subr.bf16.mxu0 0
    %1186 = vmatpush2.bf16.msra.mxu0 %v904
    %1187 = vmatprep.subr.bf16.mxu0 0
    %1188 = vmatpush2.bf16.msra.mxu0 %v903
    %1189 = vmatprep.subr.bf16.mxu0 0
    %1190 = vmatpush2.bf16.msra.mxu0 %v902
    %1191 = vmatprep.subr.bf16.mxu0 0
    %1192 = vmatpush2.bf16.msra.mxu0 %v901
    %1193 = vmatprep.subr.bf16.mxu0 0
    %1194 = vmatpush2.bf16.msra.mxu0 %v900
    %1195 = vmatprep.subr.bf16.mxu0 0
    %1196 = vmatpush2.bf16.msra.mxu0 %v899
    %1197 = vmatprep.subr.bf16.mxu0 0
    %1198 = vmatpush2.bf16.msra.mxu0 %v898
    %1199 = vmatprep.subr.bf16.mxu0 0
    %1200 = vmatpush2.bf16.msra.mxu0 %v897
    %1201 = vmatprep.mubr.bf16.mxu0 %v85
    %1202 = vmatmul.mubr.bf16.gmra.mxu0 %v84
    %v1203 = vpop.f32.mrf.mxu0
    %v1204 = vadd.f32 %v1164, %v1203
    %v1205 = vpop.f32.mrf.mxu0
    %v1206 = vpop.f32.mrf.mxu0
    %v1207 = vpop.f32.mrf.mxu0
    %1208 = vdwg.mxu0
    %1209 = vmatprep.subr.bf16.mxu0 0
    %1210 = vmatpush1.bf16.msra.mxu0 %v912
    %1211 = vmatprep.subr.bf16.mxu0 0
    %1212 = vmatpush1.bf16.msra.mxu0 %v911
    %1213 = vmatprep.subr.bf16.mxu0 0
    %1214 = vmatpush1.bf16.msra.mxu0 %v910
    %1215 = vmatprep.subr.bf16.mxu0 0
    %1216 = vmatpush1.bf16.msra.mxu0 %v909
    %1217 = vmatprep.subr.bf16.mxu0 0
    %1218 = vmatpush1.bf16.msra.mxu0 %v908
    %1219 = vmatprep.subr.bf16.mxu0 0
    %1220 = vmatpush1.bf16.msra.mxu0 %v907
    %1221 = vmatprep.subr.bf16.mxu0 0
    %1222 = vmatpush1.bf16.msra.mxu0 %v906
    %1223 = vmatprep.subr.bf16.mxu0 0
    %1224 = vmatpush1.bf16.msra.mxu0 %v905
    %1225 = vmatprep.subr.bf16.mxu0 0
    %1226 = vmatpush2.bf16.msra.mxu0 %v920
    %1227 = vmatprep.subr.bf16.mxu0 0
    %1228 = vmatpush2.bf16.msra.mxu0 %v919
    %1229 = vmatprep.subr.bf16.mxu0 0
    %1230 = vmatpush2.bf16.msra.mxu0 %v918
    %1231 = vmatprep.subr.bf16.mxu0 0
    %1232 = vmatpush2.bf16.msra.mxu0 %v917
    %1233 = vmatprep.subr.bf16.mxu0 0
    %1234 = vmatpush2.bf16.msra.mxu0 %v916
    %1235 = vmatprep.subr.bf16.mxu0 0
    %1236 = vmatpush2.bf16.msra.mxu0 %v915
    %1237 = vmatprep.subr.bf16.mxu0 0
    %1238 = vmatpush2.bf16.msra.mxu0 %v914
    %1239 = vmatprep.subr.bf16.mxu0 0
    %1240 = vmatpush2.bf16.msra.mxu0 %v913
    %1241 = vmatprep.mubr.bf16.mxu0 %v87
    %1242 = vmatmul.mubr.bf16.gmra.mxu0 %v86
    %v1243 = vpop.f32.mrf.mxu0
    %v1244 = vadd.f32 %v1204, %v1243
    %v1245 = vpop.f32.mrf.mxu0
    %v1246 = vpop.f32.mrf.mxu0
    %v1247 = vpop.f32.mrf.mxu0
    %1248 = vdwg.mxu0
    %1249 = vmatprep.subr.bf16.mxu0 0
    %1250 = vmatpush1.bf16.msra.mxu0 %v928
    %1251 = vmatprep.subr.bf16.mxu0 0
    %1252 = vmatpush1.bf16.msra.mxu0 %v927
    %1253 = vmatprep.subr.bf16.mxu0 0
    %1254 = vmatpush1.bf16.msra.mxu0 %v926
    %1255 = vmatprep.subr.bf16.mxu0 0
    %1256 = vmatpush1.bf16.msra.mxu0 %v925
    %1257 = vmatprep.subr.bf16.mxu0 0
    %1258 = vmatpush1.bf16.msra.mxu0 %v924
    %1259 = vmatprep.subr.bf16.mxu0 0
    %1260 = vmatpush1.bf16.msra.mxu0 %v923
    %1261 = vmatprep.subr.bf16.mxu0 0
    %1262 = vmatpush1.bf16.msra.mxu0 %v922
    %1263 = vmatprep.subr.bf16.mxu0 0
    %1264 = vmatpush1.bf16.msra.mxu0 %v921
    %1265 = vmatprep.subr.bf16.mxu0 0
    %1266 = vmatpush2.bf16.msra.mxu0 %v936
    %1267 = vmatprep.subr.bf16.mxu0 0
    %1268 = vmatpush2.bf16.msra.mxu0 %v935
    %1269 = vmatprep.subr.bf16.mxu0 0
    %1270 = vmatpush2.bf16.msra.mxu0 %v934
    %1271 = vmatprep.subr.bf16.mxu0 0
    %1272 = vmatpush2.bf16.msra.mxu0 %v933
    %1273 = vmatprep.subr.bf16.mxu0 0
    %1274 = vmatpush2.bf16.msra.mxu0 %v932
    %1275 = vmatprep.subr.bf16.mxu0 0
    %1276 = vmatpush2.bf16.msra.mxu0 %v931
    %1277 = vmatprep.subr.bf16.mxu0 0
    %1278 = vmatpush2.bf16.msra.mxu0 %v930
    %1279 = vmatprep.subr.bf16.mxu0 0
    %1280 = vmatpush2.bf16.msra.mxu0 %v929
    %1281 = vmatprep.mubr.bf16.mxu0 %v89
    %1282 = vmatmul.mubr.bf16.gmra.mxu0 %v88
    %v1283 = vpop.f32.mrf.mxu0
    %v1284 = vadd.f32 %v1244, %v1283
    %v1285 = vpop.f32.mrf.mxu0
    %v1286 = vpop.f32.mrf.mxu0
    %v1287 = vpop.f32.mrf.mxu0
    %1288 = vdwg.mxu0
    %1289 = vmatprep.subr.bf16.mxu0 0
    %1290 = vmatpush1.bf16.msra.mxu0 %v944
    %1291 = vmatprep.subr.bf16.mxu0 0
    %1292 = vmatpush1.bf16.msra.mxu0 %v943
    %1293 = vmatprep.subr.bf16.mxu0 0
    %1294 = vmatpush1.bf16.msra.mxu0 %v942
    %1295 = vmatprep.subr.bf16.mxu0 0
    %1296 = vmatpush1.bf16.msra.mxu0 %v941
    %1297 = vmatprep.subr.bf16.mxu0 0
    %1298 = vmatpush1.bf16.msra.mxu0 %v940
    %1299 = vmatprep.subr.bf16.mxu0 0
    %1300 = vmatpush1.bf16.msra.mxu0 %v939
    %1301 = vmatprep.subr.bf16.mxu0 0
    %1302 = vmatpush1.bf16.msra.mxu0 %v938
    %1303 = vmatprep.subr.bf16.mxu0 0
    %1304 = vmatpush1.bf16.msra.mxu0 %v937
    %1305 = vmatprep.subr.bf16.mxu0 0
    %1306 = vmatpush2.bf16.msra.mxu0 %v952
    %1307 = vmatprep.subr.bf16.mxu0 0
    %1308 = vmatpush2.bf16.msra.mxu0 %v951
    %1309 = vmatprep.subr.bf16.mxu0 0
    %1310 = vmatpush2.bf16.msra.mxu0 %v950
    %1311 = vmatprep.subr.bf16.mxu0 0
    %1312 = vmatpush2.bf16.msra.mxu0 %v949
    %1313 = vmatprep.subr.bf16.mxu0 0
    %1314 = vmatpush2.bf16.msra.mxu0 %v948
    %1315 = vmatprep.subr.bf16.mxu0 0
    %1316 = vmatpush2.bf16.msra.mxu0 %v947
    %1317 = vmatprep.subr.bf16.mxu0 0
    %1318 = vmatpush2.bf16.msra.mxu0 %v946
    %1319 = vmatprep.subr.bf16.mxu0 0
    %1320 = vmatpush2.bf16.msra.mxu0 %v945
    %1321 = vmatprep.mubr.bf16.mxu0 %v91
    %1322 = vmatmul.mubr.bf16.gmra.mxu0 %v90
    %v1323 = vpop.f32.mrf.mxu0
    %v1324 = vadd.f32 %v1284, %v1323
    %v1325 = vpop.f32.mrf.mxu0
    %v1326 = vpop.f32.mrf.mxu0
    %v1327 = vpop.f32.mrf.mxu0
    %1328 = vdwg.mxu0
    %1329 = vmatprep.subr.bf16.mxu0 0
    %1330 = vmatpush1.bf16.msra.mxu0 %v960
    %1331 = vmatprep.subr.bf16.mxu0 0
    %1332 = vmatpush1.bf16.msra.mxu0 %v959
    %1333 = vmatprep.subr.bf16.mxu0 0
    %1334 = vmatpush1.bf16.msra.mxu0 %v958
    %1335 = vmatprep.subr.bf16.mxu0 0
    %1336 = vmatpush1.bf16.msra.mxu0 %v957
    %1337 = vmatprep.subr.bf16.mxu0 0
    %1338 = vmatpush1.bf16.msra.mxu0 %v956
    %1339 = vmatprep.subr.bf16.mxu0 0
    %1340 = vmatpush1.bf16.msra.mxu0 %v955
    %1341 = vmatprep.subr.bf16.mxu0 0
    %1342 = vmatpush1.bf16.msra.mxu0 %v954
    %1343 = vmatprep.subr.bf16.mxu0 0
    %1344 = vmatpush1.bf16.msra.mxu0 %v953
    %1345 = vmatprep.subr.bf16.mxu0 0
    %1346 = vmatpush2.bf16.msra.mxu0 %v968
    %1347 = vmatprep.subr.bf16.mxu0 0
    %1348 = vmatpush2.bf16.msra.mxu0 %v967
    %1349 = vmatprep.subr.bf16.mxu0 0
    %1350 = vmatpush2.bf16.msra.mxu0 %v966
    %1351 = vmatprep.subr.bf16.mxu0 0
    %1352 = vmatpush2.bf16.msra.mxu0 %v965
    %1353 = vmatprep.subr.bf16.mxu0 0
    %1354 = vmatpush2.bf16.msra.mxu0 %v964
    %1355 = vmatprep.subr.bf16.mxu0 0
    %1356 = vmatpush2.bf16.msra.mxu0 %v963
    %1357 = vmatprep.subr.bf16.mxu0 0
    %1358 = vmatpush2.bf16.msra.mxu0 %v962
    %1359 = vmatprep.subr.bf16.mxu0 0
    %1360 = vmatpush2.bf16.msra.mxu0 %v961
    %1361 = vmatprep.mubr.bf16.mxu0 %v93
    %1362 = vmatmul.mubr.bf16.gmra.mxu0 %v92
    %v1363 = vpop.f32.mrf.mxu0
    %v1364 = vadd.f32 %v1324, %v1363
    %v1365 = vpop.f32.mrf.mxu0
    %v1366 = vpop.f32.mrf.mxu0
    %v1367 = vpop.f32.mrf.mxu0
    %1368 = vdwg.mxu0
    %1369 = vmatprep.subr.bf16.mxu0 0
    %1370 = vmatpush1.bf16.msra.mxu0 %v976
    %1371 = vmatprep.subr.bf16.mxu0 0
    %1372 = vmatpush1.bf16.msra.mxu0 %v975
    %1373 = vmatprep.subr.bf16.mxu0 0
    %1374 = vmatpush1.bf16.msra.mxu0 %v974
    %1375 = vmatprep.subr.bf16.mxu0 0
    %1376 = vmatpush1.bf16.msra.mxu0 %v973
    %1377 = vmatprep.subr.bf16.mxu0 0
    %1378 = vmatpush1.bf16.msra.mxu0 %v972
    %1379 = vmatprep.subr.bf16.mxu0 0
    %1380 = vmatpush1.bf16.msra.mxu0 %v971
    %1381 = vmatprep.subr.bf16.mxu0 0
    %1382 = vmatpush1.bf16.msra.mxu0 %v970
    %1383 = vmatprep.subr.bf16.mxu0 0
    %1384 = vmatpush1.bf16.msra.mxu0 %v969
    %1385 = vmatprep.subr.bf16.mxu0 0
    %1386 = vmatpush2.bf16.msra.mxu0 %v984
    %1387 = vmatprep.subr.bf16.mxu0 0
    %1388 = vmatpush2.bf16.msra.mxu0 %v983
    %1389 = vmatprep.subr.bf16.mxu0 0
    %1390 = vmatpush2.bf16.msra.mxu0 %v982
    %1391 = vmatprep.subr.bf16.mxu0 0
    %1392 = vmatpush2.bf16.msra.mxu0 %v981
    %1393 = vmatprep.subr.bf16.mxu0 0
    %1394 = vmatpush2.bf16.msra.mxu0 %v980
    %1395 = vmatprep.subr.bf16.mxu0 0
    %1396 = vmatpush2.bf16.msra.mxu0 %v979
    %1397 = vmatprep.subr.bf16.mxu0 0
    %1398 = vmatpush2.bf16.msra.mxu0 %v978
    %1399 = vmatprep.subr.bf16.mxu0 0
    %1400 = vmatpush2.bf16.msra.mxu0 %v977
    %1401 = vmatprep.mubr.bf16.mxu0 %v95
    %1402 = vmatmul.mubr.bf16.gmra.mxu0 %v94
    %v1403 = vpop.f32.mrf.mxu0
    %v1404 = vadd.f32 %v1364, %v1403
    %v1405 = vpop.f32.mrf.mxu0
    %v1406 = vpop.f32.mrf.mxu0
    %v1407 = vpop.f32.mrf.mxu0
    %1408 = vdwg.mxu0
    %1409 = vmatprep.subr.bf16.mxu0 0
    %1410 = vmatpush1.bf16.msra.mxu0 %v992
    %1411 = vmatprep.subr.bf16.mxu0 0
    %1412 = vmatpush1.bf16.msra.mxu0 %v991
    %1413 = vmatprep.subr.bf16.mxu0 0
    %1414 = vmatpush1.bf16.msra.mxu0 %v990
    %1415 = vmatprep.subr.bf16.mxu0 0
    %1416 = vmatpush1.bf16.msra.mxu0 %v989
    %1417 = vmatprep.subr.bf16.mxu0 0
    %1418 = vmatpush1.bf16.msra.mxu0 %v988
    %1419 = vmatprep.subr.bf16.mxu0 0
    %1420 = vmatpush1.bf16.msra.mxu0 %v987
    %1421 = vmatprep.subr.bf16.mxu0 0
    %1422 = vmatpush1.bf16.msra.mxu0 %v986
    %1423 = vmatprep.subr.bf16.mxu0 0
    %1424 = vmatpush1.bf16.msra.mxu0 %v985
    %1425 = vmatprep.subr.bf16.mxu0 0
    %1426 = vmatpush2.bf16.msra.mxu0 %v1000
    %1427 = vmatprep.subr.bf16.mxu0 0
    %1428 = vmatpush2.bf16.msra.mxu0 %v999
    %1429 = vmatprep.subr.bf16.mxu0 0
    %1430 = vmatpush2.bf16.msra.mxu0 %v998
    %1431 = vmatprep.subr.bf16.mxu0 0
    %1432 = vmatpush2.bf16.msra.mxu0 %v997
    %1433 = vmatprep.subr.bf16.mxu0 0
    %1434 = vmatpush2.bf16.msra.mxu0 %v996
    %1435 = vmatprep.subr.bf16.mxu0 0
    %1436 = vmatpush2.bf16.msra.mxu0 %v995
    %1437 = vmatprep.subr.bf16.mxu0 0
    %1438 = vmatpush2.bf16.msra.mxu0 %v994
    %1439 = vmatprep.subr.bf16.mxu0 0
    %1440 = vmatpush2.bf16.msra.mxu0 %v993
    %1441 = vmatprep.mubr.bf16.mxu0 %v97
    %1442 = vmatmul.mubr.bf16.gmra.mxu0 %v96
    %v1443 = vpop.f32.mrf.mxu0
    %v1444 = vadd.f32 %v1404, %v1443
    %v1445 = vpop.f32.mrf.mxu0
    %v1446 = vpop.f32.mrf.mxu0
    %v1447 = vpop.f32.mrf.mxu0
    %1448 = vdwg.mxu0
    %v1449 = vmax.f32 %v1444, 0.0
    %v1450 = vld [vmem:[#allocation2] sm:$0xff]
    %v1451 = vld [vmem:[#allocation8] sm:$0xff]
    %v1452 = vld [vmem:[#allocation8 + $0x8] sm:$0xff]
    %v1453 = vld [vmem:[#allocation8 + $0x10] sm:$0xff]
    %v1454 = vld [vmem:[#allocation8 + $0x18] sm:$0xff]
    %v1455 = vld [vmem:[#allocation8 + $0x20] sm:$0xff]
    %v1456 = vld [vmem:[#allocation8 + $0x28] sm:$0xff]
    %v1457 = vld [vmem:[#allocation8 + $0x30] sm:$0xff]
    %v1458 = vld [vmem:[#allocation8 + $0x38] sm:$0xff]
    %v1459 = vld [vmem:[#allocation8 + $0x40] sm:$0xff]
    %v1460 = vld [vmem:[#allocation8 + $0x48] sm:$0xff]
    %v1461 = vld [vmem:[#allocation8 + $0x50] sm:$0xff]
    %v1462 = vld [vmem:[#allocation8 + $0x58] sm:$0xff]
    %v1463 = vld [vmem:[#allocation8 + $0x60] sm:$0xff]
    %v1464 = vld [vmem:[#allocation8 + $0x68] sm:$0xff]
    %v1465 = vld [vmem:[#allocation8 + $0x70] sm:$0xff]
    %v1466 = vld [vmem:[#allocation8 + $0x78] sm:$0xff]
    %1467 = vmatprep.subr.mxu0 0.0
    %1468 = vmatpush1.msra.mxu0 %v1466
    %1469 = vmatprep.subr.mxu0 0.0
    %1470 = vmatpush1.msra.mxu0 %v1465
    %1471 = vmatprep.subr.mxu0 0.0
    %1472 = vmatpush1.msra.mxu0 %v1464
    %1473 = vmatprep.subr.mxu0 0.0
    %1474 = vmatpush1.msra.mxu0 %v1463
    %1475 = vmatprep.subr.mxu0 0.0
    %1476 = vmatpush1.msra.mxu0 %v1462
    %1477 = vmatprep.subr.mxu0 0.0
    %1478 = vmatpush1.msra.mxu0 %v1461
    %1479 = vmatprep.subr.mxu0 0.0
    %1480 = vmatpush1.msra.mxu0 %v1460
    %1481 = vmatprep.subr.mxu0 0.0
    %1482 = vmatpush1.msra.mxu0 %v1459
    %1483 = vmatprep.subr.mxu0 0.0
    %1484 = vmatpush1.msra.mxu0 %v1458
    %1485 = vmatprep.subr.mxu0 0.0
    %1486 = vmatpush1.msra.mxu0 %v1457
    %1487 = vmatprep.subr.mxu0 0.0
    %1488 = vmatpush1.msra.mxu0 %v1456
    %1489 = vmatprep.subr.mxu0 0.0
    %1490 = vmatpush1.msra.mxu0 %v1455
    %1491 = vmatprep.subr.mxu0 0.0
    %1492 = vmatpush1.msra.mxu0 %v1454
    %1493 = vmatprep.subr.mxu0 0.0
    %1494 = vmatpush1.msra.mxu0 %v1453
    %1495 = vmatprep.subr.mxu0 0.0
    %1496 = vmatpush1.msra.mxu0 %v1452
    %1497 = vmatprep.subr.mxu0 0.0
    %1498 = vmatpush1.msra.mxu0 %v1451
    %1499 = vmatprep.subr.mxu0 0.0
    %1500 = vmatpush2.msra.mxu0 0.0
    %1501 = vmatprep.subr.mxu0 0.0
    %1502 = vmatpush2.msra.mxu0 0.0
    %1503 = vmatprep.subr.mxu0 0.0
    %1504 = vmatpush2.msra.mxu0 0.0
    %1505 = vmatprep.subr.mxu0 0.0
    %1506 = vmatpush2.msra.mxu0 0.0
    %1507 = vmatprep.subr.mxu0 0.0
    %1508 = vmatpush2.msra.mxu0 0.0
    %1509 = vmatprep.subr.mxu0 0.0
    %1510 = vmatpush2.msra.mxu0 0.0
    %1511 = vmatprep.subr.mxu0 0.0
    %1512 = vmatpush2.msra.mxu0 0.0
    %1513 = vmatprep.subr.mxu0 0.0
    %1514 = vmatpush2.msra.mxu0 0.0
    %1515 = vmatprep.subr.mxu0 0.0
    %1516 = vmatpush2.msra.mxu0 0.0
    %1517 = vmatprep.subr.mxu0 0.0
    %1518 = vmatpush2.msra.mxu0 0.0
    %1519 = vmatprep.subr.mxu0 0.0
    %1520 = vmatpush2.msra.mxu0 0.0
    %1521 = vmatprep.subr.mxu0 0.0
    %1522 = vmatpush2.msra.mxu0 0.0
    %1523 = vmatprep.subr.mxu0 0.0
    %1524 = vmatpush2.msra.mxu0 0.0
    %1525 = vmatprep.subr.mxu0 0.0
    %1526 = vmatpush2.msra.mxu0 0.0
    %1527 = vmatprep.subr.mxu0 0.0
    %1528 = vmatpush2.msra.mxu0 0.0
    %1529 = vmatprep.subr.mxu0 0.0
    %1530 = vmatpush2.msra.mxu0 0.0
    %1531 = vmatprep.mubr.f32.mxu0 0.0
    %1532 = vmatmul.mubr.f32.gmra.mxu0 %v1449
    %v1533 = vpop.f32.mrf.mxu0
    %v1534 = vadd.f32 0.0, %v1533
    %v1535 = vpop.f32.mrf.mxu0
    %1536 = vdwg.mxu0
    %v1537 = vadd.f32 %v1450, %v1534
    %1538 = vst [vmem:[#allocation2] sm:$0xff] %v1537
    // Predicated region
    $region38: #{tpu_custom_call.1} parent=1 // pred_check
      %p1539 = pneg %p61
    $region39: #{tpu_custom_call.1} parent=1 // pred_check_branch
      %1541 = sbr.rel (%p1539) target = $region41
    $region40: #{tpu_custom_call.1} parent=1 // pred_region
      %v1542 = vld [vmem:[#allocation2] sm:$0xff]
      %v1543 = vld [vmem:[%s4] sm:$0x1]
      %v1545 = vlaneseq
      %v1546 = vshrl.u32 %v1545, 7
      %v1547 = vsub.s32 0, %v1546
      %v1548 = vrot.slane %v1543, %v1547
      %v1550 = vadd.f32 %v1542, %v1548
      %1551 = vst [vmem:[#allocation9] sm:$0xff] %v1550
    $region41: #{tpu_custom_call.1} parent=1 // pred_fallthru
      _
    // Predicated region
    $region42: #{tpu_custom_call.1} parent=1 // pred_check
      _
    $region43: #{tpu_custom_call.1} parent=1 // pred_check_branch
      %1553 = sbr.rel (0) target = $region45
    $region44: #{tpu_custom_call.1} parent=1 // pred_region
      %s1555 = ssub.s32 128, 128
      %1556 = vsyncadd [#allocation5], %s1555
      %s1558 = sshll.u32 [#allocation9], 4
      %s1559 = int_to_ptr.vmem [resolvable:$true] %s1558
      %1561 = dma.vmem_to_hbm [thread:$0]  %s1559, 128, %s5, [#allocation5]
    $region45: #{tpu_custom_call.1} parent=1 // pred_fallthru
      _
    // Predicated region
    $region46: #{tpu_custom_call.1} parent=1 // pred_check
      _
    $region47: #{tpu_custom_call.1} parent=1 // pred_check_branch
      %1563 = sbr.rel (0) target = $region49
    $region48: #{tpu_custom_call.1} parent=1 // pred_region
      %1564 = dma.done [#allocation5], 128
    $region49: #{tpu_custom_call.1} parent=1 // pred_fallthru
      _
    %1565 = vsyncpa [#allocation4], 1
    %1566 = vsyncpa [#allocation7], 1
    %1567 = vsyncpa [#allocation5], 1

</llo_original>
